<compile_context>
chip_gen: v7x
topology: tpu7x:2x2x1
jax: 0.10.0
libtpu: 0.0.40
codegen_flags: <defaults>
</compile_context>

<pallas_src>
import functools

import jax
import jax.numpy as jnp
from jax import lax
from jax.experimental import pallas as pl
from jax.experimental.pallas import tpu as pltpu


def _round_up(x, m):
    return ((x + m - 1) // m) * m


def _nce_kernel(zi_ref, zj_ref, repc_ref, out_ref, acc_i, acc_j, *,
                batch, bp, tr, tc, inv_t, use_bf16):
    r = pl.program_id(0)   # row tile over one half (B rows, padded to bp)
    c = pl.program_id(1)   # column tile over cat([z_i, z_j]) (2*bp rows)

    @pl.when(c == 0)
    def _():
        acc_i[...] = jnp.zeros_like(acc_i)
        acc_j[...] = jnp.zeros_like(acc_j)

    def l2_normalize(x):
        x = x.astype(jnp.float32)
        norm = jnp.sqrt(jnp.sum(x * x, axis=1, keepdims=True))
        return x / jnp.maximum(norm, 1e-12)   # F.normalize(p=2, dim=1)

    zi = l2_normalize(zi_ref[...])      # (TR, Dp) f32
    zj = l2_normalize(zj_ref[...])      # (TR, Dp) f32
    rc = l2_normalize(repc_ref[...])    # (TC, Dp) f32

    if use_bf16:
        zi_m = zi.astype(jnp.bfloat16)
        zj_m = zj.astype(jnp.bfloat16)
        rc_m = rc.astype(jnp.bfloat16)
    else:
        zi_m, zj_m, rc_m = zi, zj, rc

    # Contract the embedding dim of both operands: A . B^T without materializing B^T.
    dn = (((1,), (1,)), ((), ()))
    sim_i = lax.dot_general(zi_m, rc_m, dimension_numbers=dn,
                            preferred_element_type=jnp.float32)   # (TR, TC)
    sim_j = lax.dot_general(zj_m, rc_m, dimension_numbers=dn,
                            preferred_element_type=jnp.float32)   # (TR, TC)

    col = c * tc + lax.broadcasted_iota(jnp.int32, (tr, tc), 1)   # global sim column
    row = r * tr + lax.broadcasted_iota(jnp.int32, (tr, tc), 0)   # global row within a half

    # Real (non-padding) columns of the padded cat([z_i, z_j]) matrix.
    col_valid = (col < batch) | ((col >= bp) & (col < bp + batch))

    # exp shifted by the constant 1/t (sim <= 1 for unit rows) -> never overflows.
    e_i = jnp.where(col_valid & (col != row),
                    jnp.exp((sim_i - 1.0) * inv_t), 0.0)          # z_i rows: self col = row
    e_j = jnp.where(col_valid & (col != row + bp),
                    jnp.exp((sim_j - 1.0) * inv_t), 0.0)          # z_j rows: self col = bp + row

    acc_i[...] += jnp.sum(e_i, axis=1, keepdims=True)
    acc_j[...] += jnp.sum(e_j, axis=1, keepdims=True)

    @pl.when(c == pl.num_programs(1) - 1)
    def _():
        # Positives via elementwise row dot (sim[k, k+B] == sim[k+B, k]); reused for both halves.
        pos = jnp.sum(zi * zj, axis=1, keepdims=True)             # (TR, 1) f32
        # Per-row loss pair in log form, with the exp shift folded back in:
        #   (log(denom_i) - pos/t) + (log(denom_j) - pos/t)
        losses = (jnp.log(acc_i[...]) + jnp.log(acc_j[...])
                  + 2.0 * inv_t * (1.0 - pos))                    # (TR, 1)
        row_id = r * tr + lax.broadcasted_iota(jnp.int32, (tr, 1), 0)
        losses = jnp.where(row_id < batch, losses, 0.0)           # drop padded rows
        out_ref[...] = losses.reshape(1, tr, 1)


def nce_loss(proj_1, proj_2, temperature=0.5, *, use_bf16_matmul=True):
    batch, dim = proj_1.shape
    assert proj_2.shape == (batch, dim)

    # ---- padding / tiling plan ((8, 128)-aligned) ----
    dp = _round_up(dim, 128)
    tr = min(256, _round_up(batch, 8))      # row tile over one half
    bp = _round_up(batch, tr)               # padded half size
    tc = min(512, 2 * bp)                   # column tile over the 2*bp reps rows
    # Shrink the column tile for very large embedding dims so the double-buffered
    # working set stays inside every generation's scoped-VMEM budget (incl. v7x/v5e).
    while tc > 128 and 8 * (2 * tr + tc) * dp > 24 * 1024 * 1024:
        tc //= 2

    grid = (bp // tr, (2 * bp) // tc)

    def _pad(x):
        return jnp.pad(x.astype(jnp.float32), ((0, bp - batch), (0, dp - dim)))

    zi_p = _pad(proj_1)                                   # (bp, dp)  raw (normalized in-kernel)
    zj_p = _pad(proj_2)                                   # (bp, dp)
    reps = jnp.concatenate([zi_p, zj_p], axis=0)          # (2*bp, dp)

    kernel = functools.partial(
        _nce_kernel, batch=batch, bp=bp, tr=tr, tc=tc,
        inv_t=float(1.0 / temperature), use_bf16=use_bf16_matmul)

    # Rough VMEM need: double-buffered f32 input tiles + (TR,TC) intermediates + slack.
    vmem_est = 8 * (2 * tr + tc) * dp + 16 * tr * tc + (2 << 20)
    vmem_limit = int(min(max(vmem_est, 24 * 1024 * 1024), 48 * 1024 * 1024))

    partial_losses = pl.pallas_call(
        kernel,
        out_shape=jax.ShapeDtypeStruct((bp // tr, tr, 1), jnp.float32),
        grid_spec=pltpu.PrefetchScalarGridSpec(
            num_scalar_prefetch=0,
            grid=grid,
            in_specs=[
                pl.BlockSpec((tr, dp), lambda r, c: (r, 0)),   # z_i row tile
                pl.BlockSpec((tr, dp), lambda r, c: (r, 0)),   # z_j row tile
                pl.BlockSpec((tc, dp), lambda r, c: (c, 0)),   # reps column tile
            ],
            out_specs=pl.BlockSpec((1, tr, 1), lambda r, c: (r, 0, 0)),
            scratch_shapes=[
                pltpu.VMEM((tr, 1), jnp.float32),   # denominator acc, z_i half
                pltpu.VMEM((tr, 1), jnp.float32),   # denominator acc, z_j half
            ],
        ),
        compiler_params=pltpu.CompilerParams(
            dimension_semantics=("parallel", "arbitrary"),
            vmem_limit_bytes=vmem_limit,
        ),
    )(zi_p, zj_p, reps)

    return jnp.sum(partial_losses) / (2.0 * batch)


def _reference_nce_loss(proj_1, proj_2, temperature=0.5):
    # Pure-JAX reference mirroring the PyTorch module.
    batch = proj_1.shape[0]

    def norm(x):
        n = jnp.linalg.norm(x, axis=1, keepdims=True)
        return x / jnp.maximum(n, 1e-12)

    reps = jnp.concatenate([norm(proj_1), norm(proj_2)], axis=0)
    sim = reps @ reps.T
    mask = 1.0 - jnp.eye(2 * batch)
    sim_ij = jnp.diagonal(sim, offset=batch)
    sim_ji = jnp.diagonal(sim, offset=-batch)
    positives = jnp.concatenate([sim_ij, sim_ji], axis=0)
    nom = jnp.exp(positives / temperature)
    denom = jnp.sum(mask * jnp.exp(sim / temperature), axis=1)
    return jnp.sum(-jnp.log(nom / denom)) / (2 * batch)


if __name__ == "__main__":
    key = jax.random.PRNGKey(0)
    k1, k2, k3, k4 = jax.random.split(key, 4)

    # Small shape from the module's forward: [batch, embedding_dim]
    batch, dim = 4, 32
    proj_1 = jax.random.normal(k1, (batch, dim), dtype=jnp.float32)
    proj_2 = jax.random.normal(k2, (batch, dim), dtype=jnp.float32)

    ref = _reference_nce_loss(proj_1, proj_2, temperature=0.5)

    loss_f32 = nce_loss(proj_1, proj_2, temperature=0.5, use_bf16_matmul=False)
    jax.block_until_ready(loss_f32)
    assert jnp.allclose(loss_f32, ref, atol=1e-4, rtol=1e-4), (loss_f32, ref)

    loss_bf16 = nce_loss(proj_1, proj_2, temperature=0.5, use_bf16_matmul=True)
    jax.block_until_ready(loss_bf16)
    assert jnp.allclose(loss_bf16, ref, atol=3e-2, rtol=3e-2), (loss_bf16, ref)

    # Exercise the multi-tile / padded path (grid > 1 on both axes).
    b2, d2 = 300, 200
    p1 = jax.random.normal(k3, (b2, d2), dtype=jnp.float32)
    p2 = jax.random.normal(k4, (b2, d2), dtype=jnp.float32)
    ref2 = _reference_nce_loss(p1, p2, temperature=0.5)

    loss2_f32 = nce_loss(p1, p2, temperature=0.5, use_bf16_matmul=False)
    jax.block_until_ready(loss2_f32)
    assert jnp.allclose(loss2_f32, ref2, atol=1e-4, rtol=1e-4), (loss2_f32, ref2)

    loss2_bf16 = nce_loss(p1, p2, temperature=0.5, use_bf16_matmul=True)
    jax.block_until_ready(loss2_bf16)
    assert jnp.allclose(loss2_bf16, ref2, atol=3e-2, rtol=3e-2), (loss2_bf16, ref2)

    print("KERNEL_OK")
</pallas_src>

<mosaic_0001>
module attributes {stable_mosaic.version = 11 : i64} {
  func.func @_nce_kernel(%arg0: i32, %arg1: i32, %arg2: memref<8x128xf32, #tpu.memory_space<vmem>>, %arg3: memref<8x128xf32, #tpu.memory_space<vmem>>, %arg4: memref<16x128xf32, #tpu.memory_space<vmem>>, %arg5: memref<1x8x1xf32, #tpu.memory_space<vmem>>, %arg6: memref<8x1xf32, #tpu.memory_space<vmem>>, %arg7: memref<8x1xf32, #tpu.memory_space<vmem>>) attributes {dimension_semantics = [#tpu.dimension_semantics<parallel>, #tpu.dimension_semantics<arbitrary>], iteration_bounds = array<i64: 1, 1>, scalar_prefetch = 0 : i64, scratch_operands = 2 : i64, tpu.core_type = #tpu.core_type<tc>, window_params = [{transform_indices = @transform_0, window_bounds = array<i64: 8, 128>}, {transform_indices = @transform_1, window_bounds = array<i64: 8, 128>}, {transform_indices = @transform_2, window_bounds = array<i64: 16, 128>}, {transform_indices = @transform_3, window_bounds = array<i64: 1, 8, 1>}]} {
    %c0_i32 = arith.constant 0 : i32
    %0 = arith.cmpi eq, %arg1, %c0_i32 : i32
    %1 = arith.extui %0 : i1 to i32
    %c0_i32_0 = arith.constant 0 : i32
    %2 = arith.cmpi ne, %1, %c0_i32_0 : i32
    scf.if %2 {
      %cst_33 = arith.constant 0.000000e+00 : f32
      %81 = vector.broadcast %cst_33 : f32 to vector<8x1xf32>
      %c0_34 = arith.constant 0 : index
      %c0_35 = arith.constant 0 : index
      %82 = vector.load %arg6[%c0_34, %c0_35] : memref<8x1xf32, #tpu.memory_space<vmem>>, vector<8x1xf32>
      tpu.vector_store %arg6[%c0_34, %c0_35], %81 {strides = array<i32>} : memref<8x1xf32, #tpu.memory_space<vmem>>, vector<8x1xf32>,
      %cst_36 = arith.constant 0.000000e+00 : f32
      %83 = vector.broadcast %cst_36 : f32 to vector<8x1xf32>
      %c0_37 = arith.constant 0 : index
      %c0_38 = arith.constant 0 : index
      %84 = vector.load %arg7[%c0_37, %c0_38] : memref<8x1xf32, #tpu.memory_space<vmem>>, vector<8x1xf32>
      tpu.vector_store %arg7[%c0_37, %c0_38], %83 {strides = array<i32>} : memref<8x1xf32, #tpu.memory_space<vmem>>, vector<8x1xf32>,
    } else {
    }
    %c0 = arith.constant 0 : index
    %c0_1 = arith.constant 0 : index
    %3 = vector.load %arg2[%c0, %c0_1] : memref<8x128xf32, #tpu.memory_space<vmem>>, vector<8x128xf32>
    %4 = arith.mulf %3, %3 : vector<8x128xf32>
    %cst = arith.constant dense<0.000000e+00> : vector<8xf32>
    %5 = vector.multi_reduction <add>, %4, %cst [1] : vector<8x128xf32> to vector<8xf32>
    %6 = vector.shape_cast %5 : vector<8xf32> to vector<8x1xf32>
    %7 = math.sqrt %6 : vector<8x1xf32>
    %cst_2 = arith.constant 9.99999996E-13 : f32
    %8 = vector.broadcast %cst_2 : f32 to vector<8x1xf32>
    %9 = arith.maximumf %7, %8 : vector<8x1xf32>
    %10 = vector.broadcast %9 : vector<8x1xf32> to vector<8x128xf32>
    %11 = arith.divf %3, %10 : vector<8x128xf32>
    %c0_3 = arith.constant 0 : index
    %c0_4 = arith.constant 0 : index
    %12 = vector.load %arg3[%c0_3, %c0_4] : memref<8x128xf32, #tpu.memory_space<vmem>>, vector<8x128xf32>
    %13 = arith.mulf %12, %12 : vector<8x128xf32>
    %cst_5 = arith.constant dense<0.000000e+00> : vector<8xf32>
    %14 = vector.multi_reduction <add>, %13, %cst_5 [1] : vector<8x128xf32> to vector<8xf32>
    %15 = vector.shape_cast %14 : vector<8xf32> to vector<8x1xf32>
    %16 = math.sqrt %15 : vector<8x1xf32>
    %cst_6 = arith.constant 9.99999996E-13 : f32
    %17 = vector.broadcast %cst_6 : f32 to vector<8x1xf32>
    %18 = arith.maximumf %16, %17 : vector<8x1xf32>
    %19 = vector.broadcast %18 : vector<8x1xf32> to vector<8x128xf32>
    %20 = arith.divf %12, %19 : vector<8x128xf32>
    %c0_7 = arith.constant 0 : index
    %c0_8 = arith.constant 0 : index
    %21 = vector.load %arg4[%c0_7, %c0_8] : memref<16x128xf32, #tpu.memory_space<vmem>>, vector<16x128xf32>
    %22 = arith.mulf %21, %21 : vector<16x128xf32>
    %cst_9 = arith.constant dense<0.000000e+00> : vector<16xf32>
    %23 = vector.multi_reduction <add>, %22, %cst_9 [1] : vector<16x128xf32> to vector<16xf32>
    %24 = vector.shape_cast %23 : vector<16xf32> to vector<16x1xf32>
    %25 = math.sqrt %24 : vector<16x1xf32>
    %cst_10 = arith.constant 9.99999996E-13 : f32
    %26 = vector.broadcast %cst_10 : f32 to vector<16x1xf32>
    %27 = arith.maximumf %25, %26 : vector<16x1xf32>
    %28 = vector.broadcast %27 : vector<16x1xf32> to vector<16x128xf32>
    %29 = arith.divf %21, %28 : vector<16x128xf32>
    %cst_11 = arith.constant dense<0.000000e+00> : vector<8x16xf32>
    %30 = tpu.matmul %11, %29, %cst_11 {dimension_numbers = #tpu.dot_dimension_numbers<[1], [1], [0], [0], [0, 0, 1, 0], [], []>} : vector<8x128xf32>, vector<16x128xf32>, vector<8x16xf32> -> vector<8x16xf32>
    %cst_12 = arith.constant dense<0.000000e+00> : vector<8x16xf32>
    %31 = tpu.matmul %20, %29, %cst_12 {dimension_numbers = #tpu.dot_dimension_numbers<[1], [1], [0], [0], [0, 0, 1, 0], [], []>} : vector<8x128xf32>, vector<16x128xf32>, vector<8x16xf32> -> vector<8x16xf32>
    %c16_i32 = arith.constant 16 : i32
    %32 = arith.muli %arg1, %c16_i32 : i32
    %33 = tpu.iota {dimensions = array<i32: 1>} : vector<8x16xi32>
    %34 = vector.broadcast %32 : i32 to vector<8x16xi32>
    %35 = arith.addi %34, %33 : vector<8x16xi32>
    %c8_i32 = arith.constant 8 : i32
    %36 = arith.muli %arg0, %c8_i32 : i32
    %37 = tpu.iota {dimensions = array<i32: 0>} : vector<8x16xi32>
    %38 = vector.broadcast %36 : i32 to vector<8x16xi32>
    %39 = arith.addi %38, %37 : vector<8x16xi32>
    %c4_i32 = arith.constant 4 : i32
    %40 = vector.broadcast %c4_i32 : i32 to vector<8x16xi32>
    %41 = arith.cmpi slt, %35, %40 : vector<8x16xi32>
    %c8_i32_13 = arith.constant 8 : i32
    %42 = vector.broadcast %c8_i32_13 : i32 to vector<8x16xi32>
    %43 = arith.cmpi sge, %35, %42 : vector<8x16xi32>
    %c12_i32 = arith.constant 12 : i32
    %44 = vector.broadcast %c12_i32 : i32 to vector<8x16xi32>
    %45 = arith.cmpi slt, %35, %44 : vector<8x16xi32>
    %46 = arith.andi %43, %45 : vector<8x16xi1>
    %47 = arith.ori %41, %46 : vector<8x16xi1>
    %48 = arith.cmpi ne, %35, %39 : vector<8x16xi32>
    %49 = arith.andi %47, %48 : vector<8x16xi1>
    %cst_14 = arith.constant 1.000000e+00 : f32
    %50 = vector.broadcast %cst_14 : f32 to vector<8x16xf32>
    %51 = arith.subf %30, %50 : vector<8x16xf32>
    %cst_15 = arith.constant 2.000000e+00 : f32
    %52 = vector.broadcast %cst_15 : f32 to vector<8x16xf32>
    %53 = arith.mulf %51, %52 : vector<8x16xf32>
    %54 = math.exp %53 : vector<8x16xf32>
    %cst_16 = arith.constant 0.000000e+00 : f32
    %55 = vector.broadcast %cst_16 : f32 to vector<8x16xf32>
    %56 = arith.select %49, %54, %55 : vector<8x16xi1>, vector<8x16xf32>
    %c8_i32_17 = arith.constant 8 : i32
    %57 = vector.broadcast %c8_i32_17 : i32 to vector<8x16xi32>
    %58 = arith.addi %39, %57 : vector<8x16xi32>
    %59 = arith.cmpi ne, %35, %58 : vector<8x16xi32>
    %60 = arith.andi %47, %59 : vector<8x16xi1>
    %cst_18 = arith.constant 1.000000e+00 : f32
    %61 = vector.broadcast %cst_18 : f32 to vector<8x16xf32>
    %62 = arith.subf %31, %61 : vector<8x16xf32>
    %cst_19 = arith.constant 2.000000e+00 : f32
    %63 = vector.broadcast %cst_19 : f32 to vector<8x16xf32>
    %64 = arith.mulf %62, %63 : vector<8x16xf32>
    %65 = math.exp %64 : vector<8x16xf32>
    %cst_20 = arith.constant 0.000000e+00 : f32
    %66 = vector.broadcast %cst_20 : f32 to vector<8x16xf32>
    %67 = arith.select %60, %65, %66 : vector<8x16xi1>, vector<8x16xf32>
    %c0_21 = arith.constant 0 : index
    %c0_22 = arith.constant 0 : index
    %68 = vector.load %arg6[%c0_21, %c0_22] : memref<8x1xf32, #tpu.memory_space<vmem>>, vector<8x1xf32>
    %cst_23 = arith.constant dense<0.000000e+00> : vector<8xf32>
    %69 = vector.multi_reduction <add>, %56, %cst_23 [1] : vector<8x16xf32> to vector<8xf32>
    %70 = vector.shape_cast %69 : vector<8xf32> to vector<8x1xf32>
    %71 = arith.addf %68, %70 : vector<8x1xf32>
    %c0_24 = arith.constant 0 : index
    %c0_25 = arith.constant 0 : index
    %72 = vector.load %arg6[%c0_24, %c0_25] : memref<8x1xf32, #tpu.memory_space<vmem>>, vector<8x1xf32>
    tpu.vector_store %arg6[%c0_24, %c0_25], %71 {strides = array<i32>} : memref<8x1xf32, #tpu.memory_space<vmem>>, vector<8x1xf32>,
    %c0_26 = arith.constant 0 : index
    %c0_27 = arith.constant 0 : index
    %73 = vector.load %arg7[%c0_26, %c0_27] : memref<8x1xf32, #tpu.memory_space<vmem>>, vector<8x1xf32>
    %cst_28 = arith.constant dense<0.000000e+00> : vector<8xf32>
    %74 = vector.multi_reduction <add>, %67, %cst_28 [1] : vector<8x16xf32> to vector<8xf32>
    %75 = vector.shape_cast %74 : vector<8xf32> to vector<8x1xf32>
    %76 = arith.addf %73, %75 : vector<8x1xf32>
    %c0_29 = arith.constant 0 : index
    %c0_30 = arith.constant 0 : index
    %77 = vector.load %arg7[%c0_29, %c0_30] : memref<8x1xf32, #tpu.memory_space<vmem>>, vector<8x1xf32>
    tpu.vector_store %arg7[%c0_29, %c0_30], %76 {strides = array<i32>} : memref<8x1xf32, #tpu.memory_space<vmem>>, vector<8x1xf32>,
    %c0_i32_31 = arith.constant 0 : i32
    %78 = arith.cmpi eq, %arg1, %c0_i32_31 : i32
    %79 = arith.extui %78 : i1 to i32
    %c0_i32_32 = arith.constant 0 : i32
    %80 = arith.cmpi ne, %79, %c0_i32_32 : i32
    scf.if %80 {
      %81 = arith.mulf %11, %20 : vector<8x128xf32>
      %cst_33 = arith.constant dense<0.000000e+00> : vector<8xf32>
      %82 = vector.multi_reduction <add>, %81, %cst_33 [1] : vector<8x128xf32> to vector<8xf32>
      %83 = vector.shape_cast %82 : vector<8xf32> to vector<8x1xf32>
      %c0_34 = arith.constant 0 : index
      %c0_35 = arith.constant 0 : index
      %84 = vector.load %arg6[%c0_34, %c0_35] : memref<8x1xf32, #tpu.memory_space<vmem>>, vector<8x1xf32>
      %85 = math.log %84 : vector<8x1xf32>
      %c0_36 = arith.constant 0 : index
      %c0_37 = arith.constant 0 : index
      %86 = vector.load %arg7[%c0_36, %c0_37] : memref<8x1xf32, #tpu.memory_space<vmem>>, vector<8x1xf32>
      %87 = math.log %86 : vector<8x1xf32>
      %88 = arith.addf %85, %87 : vector<8x1xf32>
      %cst_38 = arith.constant 1.000000e+00 : f32
      %89 = vector.broadcast %cst_38 : f32 to vector<8x1xf32>
      %90 = arith.subf %89, %83 : vector<8x1xf32>
      %cst_39 = arith.constant 4.000000e+00 : f32
      %91 = vector.broadcast %cst_39 : f32 to vector<8x1xf32>
      %92 = arith.mulf %91, %90 : vector<8x1xf32>
      %93 = arith.addf %88, %92 : vector<8x1xf32>
      %c8_i32_40 = arith.constant 8 : i32
      %94 = arith.muli %arg0, %c8_i32_40 : i32
      %95 = tpu.iota {dimensions = array<i32: 0>} : vector<8x1xi32>
      %96 = vector.broadcast %94 : i32 to vector<8x1xi32>
      %97 = arith.addi %96, %95 : vector<8x1xi32>
      %c4_i32_41 = arith.constant 4 : i32
      %98 = vector.broadcast %c4_i32_41 : i32 to vector<8x1xi32>
      %99 = arith.cmpi slt, %97, %98 : vector<8x1xi32>
      %cst_42 = arith.constant 0.000000e+00 : f32
      %100 = vector.broadcast %cst_42 : f32 to vector<8x1xf32>
      %101 = arith.select %99, %93, %100 : vector<8x1xi1>, vector<8x1xf32>
      %102 = vector.shape_cast %101 : vector<8x1xf32> to vector<1x8x1xf32>
      %c0_43 = arith.constant 0 : index
      %c0_44 = arith.constant 0 : index
      %c0_45 = arith.constant 0 : index
      %103 = vector.load %arg5[%c0_43, %c0_44, %c0_45] : memref<1x8x1xf32, #tpu.memory_space<vmem>>, vector<1x8x1xf32>
      tpu.vector_store %arg5[%c0_43, %c0_44, %c0_45], %102 {strides = array<i32>} : memref<1x8x1xf32, #tpu.memory_space<vmem>>, vector<1x8x1xf32>,
    } else {
    }
    return
  }
  func.func @transform_0(%arg0: i32, %arg1: i32) -> (i32, i32) {
    %c0_i32 = arith.constant 0 : i32
    %c0_i32_0 = arith.constant 0 : i32
    return %arg0, %c0_i32 : i32, i32
  }
  func.func @transform_1(%arg0: i32, %arg1: i32) -> (i32, i32) {
    %c0_i32 = arith.constant 0 : i32
    %c0_i32_0 = arith.constant 0 : i32
    return %arg0, %c0_i32 : i32, i32
  }
  func.func @transform_2(%arg0: i32, %arg1: i32) -> (i32, i32) {
    %c0_i32 = arith.constant 0 : i32
    %c0_i32_0 = arith.constant 0 : i32
    return %arg1, %c0_i32 : i32, i32
  }
  func.func @transform_3(%arg0: i32, %arg1: i32) -> (i32, i32, i32) {
    %c0_i32 = arith.constant 0 : i32
    %c0_i32_0 = arith.constant 0 : i32
    %c0_i32_1 = arith.constant 0 : i32
    return %arg0, %c0_i32, %c0_i32_0 : i32, i32, i32
  }
}

</mosaic_0001>

<llo_original>
// kernel: tpu_custom_call.1
$region0: #{tpu_custom_call.1}
  #allocation0 [shape = 'u32[]', space=smem, size = 0x4, offset = 0x4, fixed_abs, tag = 'smem constant byte address 0x4 - core index']
  #allocation1 [shape = 'u32[144,128]{1,0:T(1,128)}', space=vmem, size = 0x12000, scoped, tag = 'internal scratch']
  #allocation2 [shape = 'f32[8,1]{1,0:T(8,128)}', space=vmem, size = 0x1000, scoped, tag = 'scratch operand']
  #allocation3 [shape = 'f32[8,1]{1,0:T(8,128)}', space=vmem, size = 0x1000, scoped, tag = 'scratch operand']
  %s0 = inlined_call_operand.hbm [shape: f32[8,128], index: 0, kind: input, shape index: {}]
  %s1 = inlined_call_operand.hbm [shape: f32[8,128], index: 1, kind: input, shape index: {}]
  %s2 = inlined_call_operand.hbm [shape: f32[16,128], index: 2, kind: input, shape index: {}]
  %s3 = inlined_call_operand.vmem [shape: f32[1,8,1], index: 3, kind: output, shape index: {}]
  %s4 = sld [smem:[#allocation0]]
  $region42: #{tpu_custom_call.1} parent=0
    _
  %s6 = ssub.s32 1, %s4
  %s7 = scalar_select 0, %s6, %s4
  $region1: #{tpu_custom_call.1} parent=0
    #allocation4 [shape = 'u8[4096]{0}', space=vmem, size = 0x1000, scoped, tag = 'input window, operand 0, single buffered']
    #allocation5 [shape = 's32[1]{0}', space=sflag, size = 0x4, scoped, tag = 'scoped memory for tpu_custom_call.1']
    #allocation6 [shape = 'u8[4096]{0}', space=vmem, size = 0x1000, scoped, tag = 'input window, operand 1, single buffered']
    #allocation7 [shape = 's32[1]{0}', space=sflag, size = 0x4, scoped, tag = 'scoped memory for tpu_custom_call.1']
    #allocation8 [shape = 'u8[8192]{0}', space=vmem, size = 0x2000, scoped, tag = 'input window, operand 2, single buffered']
    %8 = vsyncpa [#allocation5], 0
    %9 = vsyncpa [#allocation7], 0
    // Predicated region
    $region2: #{tpu_custom_call.1} parent=1 // pred_check
      _
    $region3: #{tpu_custom_call.1} parent=1 // pred_check_branch
      %11 = sbr.rel (0) target = $region5
    $region4: #{tpu_custom_call.1} parent=1 // pred_region
      %s13 = ssub.s32 128, 128
      %14 = vsyncadd [#allocation5], %s13
      %s16 = sshll.u32 [#allocation4], 4
      %s17 = int_to_ptr.vmem [resolvable:$true] %s16
      %19 = dma.hbm_to_vmem [thread:$0]  %s0, 128, %s17, [#allocation5]
    $region5: #{tpu_custom_call.1} parent=1 // pred_fallthru
      _
    // Predicated region
    $region6: #{tpu_custom_call.1} parent=1 // pred_check
      _
    $region7: #{tpu_custom_call.1} parent=1 // pred_check_branch
      %21 = sbr.rel (0) target = $region9
    $region8: #{tpu_custom_call.1} parent=1 // pred_region
      %s23 = ssub.s32 128, 128
      %24 = vsyncadd [#allocation7], %s23
      %s26 = sshll.u32 [#allocation6], 4
      %s27 = int_to_ptr.vmem [resolvable:$true] %s26
      %29 = dma.hbm_to_vmem [thread:$0]  %s1, 128, %s27, [#allocation7]
    $region9: #{tpu_custom_call.1} parent=1 // pred_fallthru
      _
    // Predicated region
    $region10: #{tpu_custom_call.1} parent=1 // pred_check
      _
    $region11: #{tpu_custom_call.1} parent=1 // pred_check_branch
      %31 = sbr.rel (0) target = $region13
    $region12: #{tpu_custom_call.1} parent=1 // pred_region
      %s33 = ssub.s32 256, 256
      %34 = vsyncadd [#allocation7], %s33
      %s35 = sshll.u32 [#allocation8], 4
      %s36 = int_to_ptr.vmem [resolvable:$true] %s35
      %41 = dma.hbm_to_vmem [thread:$0]  %s2, 256, %s36, [#allocation7], 128, 128, 8
    $region13: #{tpu_custom_call.1} parent=1 // pred_fallthru
      _
    // Predicated region
    $region14: #{tpu_custom_call.1} parent=1 // pred_check
      _
    $region15: #{tpu_custom_call.1} parent=1 // pred_check_branch
      %43 = sbr.rel (0) target = $region17
    $region16: #{tpu_custom_call.1} parent=1 // pred_region
      %44 = dma.done [#allocation5], 128
    $region17: #{tpu_custom_call.1} parent=1 // pred_fallthru
      _
    // Predicated region
    $region18: #{tpu_custom_call.1} parent=1 // pred_check
      _
    $region19: #{tpu_custom_call.1} parent=1 // pred_check_branch
      %46 = sbr.rel (0) target = $region21
    $region20: #{tpu_custom_call.1} parent=1 // pred_region
      %47 = dma.done [#allocation7], 128
    $region21: #{tpu_custom_call.1} parent=1 // pred_fallthru
      _
    // Predicated region
    $region22: #{tpu_custom_call.1} parent=1 // pred_check
      _
    $region23: #{tpu_custom_call.1} parent=1 // pred_check_branch
      %49 = sbr.rel (0) target = $region25
    $region24: #{tpu_custom_call.1} parent=1 // pred_region
      %50 = dma.done [#allocation7], 256
    $region25: #{tpu_custom_call.1} parent=1 // pred_fallthru
      _
    %p51 = scmp.eq.s32.totalorder 0, 0
    // Predicated region
    $region26: #{tpu_custom_call.1} parent=1 // pred_check
      %p52 = pneg %p51
    $region27: #{tpu_custom_call.1} parent=1 // pred_check_branch
      %54 = sbr.rel (%p52) target = $region29
    $region28: #{tpu_custom_call.1} parent=1 // pred_region
      %vm55 = vcmask 7168
      %56 = vst.msk [vmem:[#allocation2] sm:$0xff] %vm55, 0.0
      %57 = vst.msk [vmem:[#allocation3] sm:$0xff] %vm55, 0.0
    $region29: #{tpu_custom_call.1} parent=1 // pred_fallthru
      _
    %v58 = vld [vmem:[#allocation4] sm:$0xff]
    %v59 = vmul.f32 %v58, %v58
    %60 = vadd.xlane.f32.xlu0 %v59
    %v61 = vpop.xlane.xlu0 %60
    %v62 = vrsqrt.pop %v61
    %v63 = vmul.f32 %v61, %v62
    %vm64 = vcmp.eq.f32.partialorder %v61, inf
    %v65 = vsel %vm64, %v61, %v63
    %vm66 = vcmp.eq.f32.partialorder %v61, 0.0
    %v67 = vand.u32 %v61, 2147483648
    %v68 = vsel %vm66, %v67, %v65
    %v69 = vmax.f32 %v68, 1e-12
    %v70 = vrcp.pop %v69
    %v71 = vmul.f32 %v58, %v70
    %v72 = vld [vmem:[#allocation6] sm:$0xff]
    %v73 = vmul.f32 %v72, %v72
    %74 = vadd.xlane.f32.xlu0 %v73
    %v75 = vpop.xlane.xlu0 %74
    %v76 = vrsqrt.pop %v75
    %v77 = vmul.f32 %v75, %v76
    %vm78 = vcmp.eq.f32.partialorder %v75, inf
    %v79 = vsel %vm78, %v75, %v77
    %vm80 = vcmp.eq.f32.partialorder %v75, 0.0
    %v81 = vand.u32 %v75, 2147483648
    %v82 = vsel %vm80, %v81, %v79
    %v83 = vmax.f32 %v82, 1e-12
    %v84 = vrcp.pop %v83
    %v85 = vmul.f32 %v72, %v84
    %v86 = vld [vmem:[#allocation8] sm:$0xff]
    %v87 = vld [vmem:[#allocation8 + $0x8] sm:$0xff]
    %v88 = vmul.f32 %v86, %v86
    %v89 = vmul.f32 %v87, %v87
    %90 = vadd.xlane.f32.xlu0 %v88
    %v91 = vpop.xlane.xlu0 %90
    %92 = vadd.xlane.f32.xlu0 %v89
    %v93 = vpop.xlane.xlu0 %92
    %v94 = vrsqrt.pop %v91
    %v95 = vmul.f32 %v91, %v94
    %vm96 = vcmp.eq.f32.partialorder %v91, inf
    %v97 = vsel %vm96, %v91, %v95
    %vm98 = vcmp.eq.f32.partialorder %v91, 0.0
    %v99 = vand.u32 %v91, 2147483648
    %v100 = vsel %vm98, %v99, %v97
    %v101 = vrsqrt.pop %v93
    %v102 = vmul.f32 %v93, %v101
    %vm103 = vcmp.eq.f32.partialorder %v93, inf
    %v104 = vsel %vm103, %v93, %v102
    %vm105 = vcmp.eq.f32.partialorder %v93, 0.0
    %v106 = vand.u32 %v93, 2147483648
    %v107 = vsel %vm105, %v106, %v104
    %v108 = vmax.f32 %v100, 1e-12
    %v109 = vmax.f32 %v107, 1e-12
    %v110 = vrcp.pop %v108
    %v111 = vmul.f32 %v86, %v110
    %v112 = vrcp.pop %v109
    %v113 = vmul.f32 %v87, %v112
    %114 = vmatprep.subr.mxu0 0.0
    %115 = vmatpush1.xpose.msra.mxu0 %v111
    %116 = vmatprep.subr.mxu0 0.0
    %117 = vmatpush1.xpose.msra.mxu0 %v113
    %118 = vmatprep.subr.mxu0 0.0
    %119 = vmatpush1.xpose.msra.mxu0 0.0
    %120 = vmatprep.subr.mxu0 0.0
    %121 = vmatpush1.xpose.msra.mxu0 0.0
    %122 = vmatprep.subr.mxu0 0.0
    %123 = vmatpush1.xpose.msra.mxu0 0.0
    %124 = vmatprep.subr.mxu0 0.0
    %125 = vmatpush1.xpose.msra.mxu0 0.0
    %126 = vmatprep.subr.mxu0 0.0
    %127 = vmatpush1.xpose.msra.mxu0 0.0
    %128 = vmatprep.subr.mxu0 0.0
    %129 = vmatpush1.xpose.msra.mxu0 0.0
    %130 = vmatprep.subr.mxu0 0.0
    %131 = vmatpush1.xpose.msra.mxu0 0.0
    %132 = vmatprep.subr.mxu0 0.0
    %133 = vmatpush1.xpose.msra.mxu0 0.0
    %134 = vmatprep.subr.mxu0 0.0
    %135 = vmatpush1.xpose.msra.mxu0 0.0
    %136 = vmatprep.subr.mxu0 0.0
    %137 = vmatpush1.xpose.msra.mxu0 0.0
    %138 = vmatprep.subr.mxu0 0.0
    %139 = vmatpush1.xpose.msra.mxu0 0.0
    %140 = vmatprep.subr.mxu0 0.0
    %141 = vmatpush1.xpose.msra.mxu0 0.0
    %142 = vmatprep.subr.mxu0 0.0
    %143 = vmatpush1.xpose.msra.mxu0 0.0
    %144 = vmatprep.subr.mxu0 0.0
    %145 = vmatpush1.xpose.msra.mxu0 0.0
    %146 = vmatprep.subr.mxu0 0.0
    %147 = vmatpush1.xpose.msra.mxu0 0.0
    %148 = vmatprep.subr.mxu0 0.0
    %149 = vmatpush1.xpose.msra.mxu0 0.0
    %150 = vmatprep.subr.mxu0 0.0
    %151 = vmatpush1.xpose.msra.mxu0 0.0
    %152 = vmatprep.subr.mxu0 0.0
    %153 = vmatpush1.xpose.msra.mxu0 0.0
    %154 = vmatprep.subr.mxu0 0.0
    %155 = vmatpush1.xpose.msra.mxu0 0.0
    %156 = vmatprep.subr.mxu0 0.0
    %157 = vmatpush1.xpose.msra.mxu0 0.0
    %158 = vmatprep.subr.mxu0 0.0
    %159 = vmatpush1.xpose.msra.mxu0 0.0
    %160 = vmatprep.subr.mxu0 0.0
    %161 = vmatpush1.xpose.msra.mxu0 0.0
    %162 = vmatprep.subr.mxu0 0.0
    %163 = vmatpush1.xpose.msra.mxu0 0.0
    %164 = vmatprep.subr.mxu0 0.0
    %165 = vmatpush1.xpose.msra.mxu0 0.0
    %166 = vmatprep.subr.mxu0 0.0
    %167 = vmatpush1.xpose.msra.mxu0 0.0
    %168 = vmatprep.subr.mxu0 0.0
    %169 = vmatpush1.xpose.msra.mxu0 0.0
    %170 = vmatprep.subr.mxu0 0.0
    %171 = vmatpush1.xpose.msra.mxu0 0.0
    %172 = vmatprep.subr.mxu0 0.0
    %173 = vmatpush1.xpose.msra.mxu0 0.0
    %174 = vmatprep.subr.mxu0 0.0
    %175 = vmatpush1.xpose.msra.mxu0 0.0
    %176 = vmatprep.subr.mxu0 0.0
    %177 = vmatpush1.xpose.msra.mxu0 0.0
    %178 = vmatprep.mubr.f32.mxu0 0.0
    %179 = vmatmul.mubr.f32.gmra.mrb[0].mxu0 %v71
    %v180 = vpop.f32.mrb[0].mxu0
    %v181 = vadd.f32 0.0, %v180
    %v182 = vpop.f32.mrb[0].mxu0
    %183 = vdwg.mxu0
    %184 = vmatprep.subr.mxu0 0.0
    %185 = vmatpush1.xpose.msra.mxu0 %v111
    %186 = vmatprep.subr.mxu0 0.0
    %187 = vmatpush1.xpose.msra.mxu0 %v113
    %188 = vmatprep.subr.mxu0 0.0
    %189 = vmatpush1.xpose.msra.mxu0 0.0
    %190 = vmatprep.subr.mxu0 0.0
    %191 = vmatpush1.xpose.msra.mxu0 0.0
    %192 = vmatprep.subr.mxu0 0.0
    %193 = vmatpush1.xpose.msra.mxu0 0.0
    %194 = vmatprep.subr.mxu0 0.0
    %195 = vmatpush1.xpose.msra.mxu0 0.0
    %196 = vmatprep.subr.mxu0 0.0
    %197 = vmatpush1.xpose.msra.mxu0 0.0
    %198 = vmatprep.subr.mxu0 0.0
    %199 = vmatpush1.xpose.msra.mxu0 0.0
    %200 = vmatprep.subr.mxu0 0.0
    %201 = vmatpush1.xpose.msra.mxu0 0.0
    %202 = vmatprep.subr.mxu0 0.0
    %203 = vmatpush1.xpose.msra.mxu0 0.0
    %204 = vmatprep.subr.mxu0 0.0
    %205 = vmatpush1.xpose.msra.mxu0 0.0
    %206 = vmatprep.subr.mxu0 0.0
    %207 = vmatpush1.xpose.msra.mxu0 0.0
    %208 = vmatprep.subr.mxu0 0.0
    %209 = vmatpush1.xpose.msra.mxu0 0.0
    %210 = vmatprep.subr.mxu0 0.0
    %211 = vmatpush1.xpose.msra.mxu0 0.0
    %212 = vmatprep.subr.mxu0 0.0
    %213 = vmatpush1.xpose.msra.mxu0 0.0
    %214 = vmatprep.subr.mxu0 0.0
    %215 = vmatpush1.xpose.msra.mxu0 0.0
    %216 = vmatprep.subr.mxu0 0.0
    %217 = vmatpush1.xpose.msra.mxu0 0.0
    %218 = vmatprep.subr.mxu0 0.0
    %219 = vmatpush1.xpose.msra.mxu0 0.0
    %220 = vmatprep.subr.mxu0 0.0
    %221 = vmatpush1.xpose.msra.mxu0 0.0
    %222 = vmatprep.subr.mxu0 0.0
    %223 = vmatpush1.xpose.msra.mxu0 0.0
    %224 = vmatprep.subr.mxu0 0.0
    %225 = vmatpush1.xpose.msra.mxu0 0.0
    %226 = vmatprep.subr.mxu0 0.0
    %227 = vmatpush1.xpose.msra.mxu0 0.0
    %228 = vmatprep.subr.mxu0 0.0
    %229 = vmatpush1.xpose.msra.mxu0 0.0
    %230 = vmatprep.subr.mxu0 0.0
    %231 = vmatpush1.xpose.msra.mxu0 0.0
    %232 = vmatprep.subr.mxu0 0.0
    %233 = vmatpush1.xpose.msra.mxu0 0.0
    %234 = vmatprep.subr.mxu0 0.0
    %235 = vmatpush1.xpose.msra.mxu0 0.0
    %236 = vmatprep.subr.mxu0 0.0
    %237 = vmatpush1.xpose.msra.mxu0 0.0
    %238 = vmatprep.subr.mxu0 0.0
    %239 = vmatpush1.xpose.msra.mxu0 0.0
    %240 = vmatprep.subr.mxu0 0.0
    %241 = vmatpush1.xpose.msra.mxu0 0.0
    %242 = vmatprep.subr.mxu0 0.0
    %243 = vmatpush1.xpose.msra.mxu0 0.0
    %244 = vmatprep.subr.mxu0 0.0
    %245 = vmatpush1.xpose.msra.mxu0 0.0
    %246 = vmatprep.subr.mxu0 0.0
    %247 = vmatpush1.xpose.msra.mxu0 0.0
    %248 = vmatprep.mubr.f32.mxu0 0.0
    %249 = vmatmul.mubr.f32.gmra.mrb[0].mxu0 %v85
    %v250 = vpop.f32.mrb[0].mxu0
    %v251 = vadd.f32 0.0, %v250
    %v252 = vpop.f32.mrb[0].mxu0
    %253 = vdwg.mxu0
    %s254 = smul.u32 0, 16
    %v255 = vlaneseq
    %v256 = vand.u32 %v255, 127
    %v257 = vstv %s254
    %v258 = vadd.s32 %v257, %v256
    %s259 = smul.u32 0, 8
    %v260 = vlaneseq
    %v261 = vshrl.u32 %v260, 7
    %v262 = vstv %s259
    %v263 = vadd.s32 %v262, %v261
    %vm264 = vcmp.lt.s32.totalorder %v258, 4
    %vm265 = vcmp.ge.s32.totalorder %v258, 8
    %vm266 = vcmp.lt.s32.totalorder %v258, 12
    %vm267 = vmand %vm265, %vm266
    %vm268 = vmor %vm264, %vm267
    %vm269 = vcmp.ne.s32.totalorder %v258, %v263
    %vm270 = vmand %vm268, %vm269
    %v271 = vsub.f32 %v181, 1.0
    %v272 = vmul.f32 %v271, 2.0
    %v273 = vmul.f32 %v272, 1.442695
    %v274 = vpow.pop %v273
    %v275 = vsel %vm270, %v274, 0.0
    %v276 = vadd.s32 %v263, 8
    %vm277 = vcmp.ne.s32.totalorder %v258, %v276
    %vm278 = vmand %vm268, %vm277
    %v279 = vsub.f32 %v251, 1.0
    %v280 = vmul.f32 %v279, 2.0
    %v281 = vmul.f32 %v280, 1.442695
    %v282 = vpow.pop %v281
    %v283 = vsel %vm278, %v282, 0.0
    %v284 = vld [vmem:[#allocation2] sm:$0xff]
    %vm285 = vcmask 130048
    %v286 = vsel %vm285, %v275, 0.0
    %287 = vadd.xlane.f32.xlu0 %v286
    %v288 = vpop.xlane.xlu0 %287
    %v289 = vadd.f32 %v284, %v288
    %vm290 = vcmask 7168
    %291 = vst.msk [vmem:[#allocation2] sm:$0xff] %vm290, %v289
    %v292 = vld [vmem:[#allocation3] sm:$0xff]
    %v293 = vsel %vm285, %v283, 0.0
    %294 = vadd.xlane.f32.xlu0 %v293
    %v295 = vpop.xlane.xlu0 %294
    %v296 = vadd.f32 %v292, %v295
    %297 = vst.msk [vmem:[#allocation3] sm:$0xff] %vm290, %v296
    // Predicated region
    $region30: #{tpu_custom_call.1} parent=1 // pred_check
      %p298 = pneg %p51
    $region31: #{tpu_custom_call.1} parent=1 // pred_check_branch
      %300 = sbr.rel (%p298) target = $region33
    $region32: #{tpu_custom_call.1} parent=1 // pred_region
      %v301 = vmul.f32 %v71, %v85
      %302 = vadd.xlane.f32.xlu0 %v301
      %v303 = vpop.xlane.xlu0 %302
      %v304 = vld [vmem:[#allocation2] sm:$0xff]
      %v305 = vlog2.pop %v304
      %v306 = vmul.f32 %v305, 0.6931472
      %v307 = vld [vmem:[#allocation3] sm:$0xff]
      %v308 = vlog2.pop %v307
      %v309 = vmul.f32 %v308, 0.6931472
      %v310 = vadd.f32 %v306, %v309
      %v311 = vsub.f32 1.0, %v303
      %v312 = vmul.f32 %v311, 4.0
      %v313 = vadd.f32 %v310, %v312
      %vm314 = vcmp.lt.s32.totalorder %v263, 4
      %v315 = vsel %vm314, %v313, 0.0
      %316 = vst.msk [vmem:[%s3] sm:$0xff] %vm290, %v315
    $region33: #{tpu_custom_call.1} parent=1 // pred_fallthru
      _
    // Predicated region
    $region34: #{tpu_custom_call.1} parent=1 // pred_check
      _
    $region35: #{tpu_custom_call.1} parent=1 // pred_check_branch
      %318 = sbr.rel (0) target = $region37
    $region36: #{tpu_custom_call.1} parent=1 // pred_region
      _
    $region37: #{tpu_custom_call.1} parent=1 // pred_fallthru
      _
    // Predicated region
    $region38: #{tpu_custom_call.1} parent=1 // pred_check
      _
    $region39: #{tpu_custom_call.1} parent=1 // pred_check_branch
      %320 = sbr.rel (0) target = $region41
    $region40: #{tpu_custom_call.1} parent=1 // pred_region
      _
    $region41: #{tpu_custom_call.1} parent=1 // pred_fallthru
      _
    %321 = vsyncpa [#allocation5], 1
    %322 = vsyncpa [#allocation7], 1

</llo_original>
